<compile_context>
chip_gen: v7x
topology: tpu7x:2x2x1
jax: 0.10.0
libtpu: 0.0.40
codegen_flags: <defaults>
</compile_context>

<pallas_src>
from functools import partial

import jax
import jax.numpy as jnp
from jax.experimental import pallas as pl
from jax.experimental.pallas import tpu as pltpu

_LANE = 128
_SUBLANE = 8
_EPS = 1e-5


def _round_up(n, m):
    return ((n + m - 1) // m) * m


def _vmem_capacity_bytes():
    try:
        info = pltpu.get_tpu_info()
        cap = getattr(info, "vmem_capacity_bytes", None)
        if cap:
            return int(cap)
    except Exception:
        pass
    return 64 * 1024 * 1024  # conservative default (v7x: 64 MiB per TensorCore)


# --------------------------------------------------------------------------
# Single-pass kernel: whole batch resident per feature tile (exact per-column
# min/max, no cross-tile reduction needed since columns are independent).
# --------------------------------------------------------------------------
def _scaler_onepass_kernel(x_ref, out_ref, lo_ref, hi_ref, *, lower, upper):
    x = x_ref[...].astype(jnp.float32)                      # (B, tile_d)
    lo = jnp.min(x, axis=0, keepdims=True)                  # (1, tile_d)
    hi = jnp.max(x, axis=0, keepdims=True)
    scaled = (x - lo) * pl.reciprocal(hi - lo + _EPS, approx=False)
    if lower != 0.0 or upper != 1.0:
        scaled = scaled * (upper - lower) + lower
    out_ref[...] = scaled.astype(out_ref.dtype)
    lo_ref[...] = lo.astype(lo_ref.dtype)
    hi_ref[...] = hi.astype(hi_ref.dtype)


# --------------------------------------------------------------------------
# Two-pass fallback for large batches.
# Pass 1: per-feature min/max with batch axis last ("arbitrary"); lo/hi output
#         blocks are resident accumulators across the batch axis.
# Pass 2: elementwise rescale.
# --------------------------------------------------------------------------
def _minmax_kernel(x_ref, lo_ref, hi_ref, *, batch, tile_b):
    bi = pl.program_id(1)

    @pl.when(bi == 0)
    def _():
        lo_ref[...] = jnp.full(lo_ref.shape, jnp.inf, lo_ref.dtype)
        hi_ref[...] = jnp.full(hi_ref.shape, -jnp.inf, hi_ref.dtype)

    x = x_ref[...].astype(jnp.float32)                      # (tile_b, tile_d)
    # Mask out-of-range rows of the (possibly ragged) last batch tile.
    row = bi * tile_b + jax.lax.broadcasted_iota(jnp.int32, x.shape, 0)
    valid = row < batch
    lo_ref[...] = jnp.minimum(
        lo_ref[...],
        jnp.min(jnp.where(valid, x, jnp.inf), axis=0, keepdims=True))
    hi_ref[...] = jnp.maximum(
        hi_ref[...],
        jnp.max(jnp.where(valid, x, -jnp.inf), axis=0, keepdims=True))


def _rescale_kernel(x_ref, lo_ref, hi_ref, out_ref, *, lower, upper):
    x = x_ref[...].astype(jnp.float32)
    lo = lo_ref[...]
    hi = hi_ref[...]
    scaled = (x - lo) * pl.reciprocal(hi - lo + _EPS, approx=False)
    if lower != 0.0 or upper != 1.0:
        scaled = scaled * (upper - lower) + lower
    out_ref[...] = scaled.astype(out_ref.dtype)


# --------------------------------------------------------------------------
# Wrapper
# --------------------------------------------------------------------------
def scaler_forward(x, lower: float = 0.0, upper: float = 1.0, *,
                   force_two_pass: bool = False,
                   tile_d: int | None = None, tile_b: int | None = None):
    """Training-mode forward of Scaler (first parameter update).

    Returns (scaled_x, lower_vec, upper_vec).
    """
    assert lower < upper
    b, d = x.shape
    in_bytes = x.dtype.itemsize
    out_bytes = in_bytes

    vmem_cap = _vmem_capacity_bytes()
    vmem_limit = max(32 << 20, int(vmem_cap * 0.75))   # above the scoped default
    budget = int(vmem_limit * 0.7)                     # headroom for compiler scratch

    dp_lane = _round_up(d, _LANE)

    # Bytes per lane column in the single-pass path: double-buffered x and out
    # tiles of height B, plus the tiny lo/hi rows.
    per_lane = 2 * b * (in_bytes + out_bytes) + 4 * 2 * 4
    max_tile_d = (budget // per_lane) // _LANE * _LANE
    use_onepass = (max_tile_d >= _LANE) and not force_two_pass

    if use_onepass:
        td = tile_d if tile_d is not None else min(max_tile_d, dp_lane)
        td = max(_LANE, (td // _LANE) * _LANE)
        dp = _round_up(d, td)
        xp = jnp.pad(x, ((0, 0), (0, dp - d))) if dp != d else x
        n_d = dp // td

        kernel = partial(_scaler_onepass_kernel,
                         lower=float(lower), upper=float(upper))
        out_shapes = (
            jax.ShapeDtypeStruct((b, dp), x.dtype),       # scaled x
            jax.ShapeDtypeStruct((1, dp), jnp.float32),   # lower_vec
            jax.ShapeDtypeStruct((1, dp), jnp.float32),   # upper_vec
        )
        cost = pl.CostEstimate(
            flops=5 * b * dp, transcendentals=0,
            bytes_accessed=b * dp * (in_bytes + out_bytes) + 2 * dp * 4)

        y, lo, hi = pl.pallas_call(
            kernel,
            out_shape=out_shapes,
            grid=(n_d,),
            in_specs=[pl.BlockSpec((b, td), lambda j: (0, j))],
            out_specs=(
                pl.BlockSpec((b, td), lambda j: (0, j)),
                pl.BlockSpec((1, td), lambda j: (0, j)),
                pl.BlockSpec((1, td), lambda j: (0, j)),
            ),
            compiler_params=pltpu.CompilerParams(
                dimension_semantics=("parallel",),
                vmem_limit_bytes=vmem_limit),
            cost_estimate=cost,
        )(xp)
    else:
        # Two-pass path: batch too large to keep a whole column tile resident.
        td = tile_d if tile_d is not None else min(512, dp_lane)
        td = max(_LANE, (td // _LANE) * _LANE)
        dp = _round_up(d, td)
        if tile_b is not None:
            tb = int(tile_b)
        else:
            per_row = 2 * td * (in_bytes + out_bytes)
            tb = max(_SUBLANE, (budget // per_row) // _SUBLANE * _SUBLANE)
            tb = min(tb, _round_up(b, _SUBLANE))
        xp = jnp.pad(x, ((0, 0), (0, dp - d))) if dp != d else x
        n_d = dp // td
        n_b = pl.cdiv(b, tb)

        # Pass 1: min/max reduction (batch axis last, "arbitrary").
        mm_kernel = partial(_minmax_kernel, batch=b, tile_b=tb)
        lo, hi = pl.pallas_call(
            mm_kernel,
            out_shape=(jax.ShapeDtypeStruct((1, dp), jnp.float32),
                       jax.ShapeDtypeStruct((1, dp), jnp.float32)),
            grid=(n_d, n_b),
            in_specs=[pl.BlockSpec((tb, td), lambda j, bi: (bi, j))],
            out_specs=(pl.BlockSpec((1, td), lambda j, bi: (0, j)),
                       pl.BlockSpec((1, td), lambda j, bi: (0, j))),
            compiler_params=pltpu.CompilerParams(
                dimension_semantics=("parallel", "arbitrary"),
                vmem_limit_bytes=vmem_limit),
            cost_estimate=pl.CostEstimate(
                flops=2 * b * dp, transcendentals=0,
                bytes_accessed=b * dp * in_bytes + 2 * dp * 4),
        )(xp)

        # Pass 2: elementwise rescale.
        rs_kernel = partial(_rescale_kernel,
                            lower=float(lower), upper=float(upper))
        y = pl.pallas_call(
            rs_kernel,
            out_shape=jax.ShapeDtypeStruct((b, dp), x.dtype),
            grid=(n_d, n_b),
            in_specs=[pl.BlockSpec((tb, td), lambda j, bi: (bi, j)),
                      pl.BlockSpec((1, td), lambda j, bi: (0, j)),
                      pl.BlockSpec((1, td), lambda j, bi: (0, j))],
            out_specs=pl.BlockSpec((tb, td), lambda j, bi: (bi, j)),
            compiler_params=pltpu.CompilerParams(
                dimension_semantics=("parallel", "parallel"),
                vmem_limit_bytes=vmem_limit),
            cost_estimate=pl.CostEstimate(
                flops=3 * b * dp, transcendentals=0,
                bytes_accessed=b * dp * (in_bytes + out_bytes) + 2 * dp * 4),
        )(xp, lo, hi)

    if dp != d:
        y = y[:, :d]
        lo = lo[:, :d]
        hi = hi[:, :d]
    return y, lo, hi


def _reference(x, lower=0.0, upper=1.0):
    lo = jnp.min(x, axis=0, keepdims=True)
    hi = jnp.max(x, axis=0, keepdims=True)
    scaled = (x - lo) / (hi - lo + _EPS)
    if lower != 0.0 or upper != 1.0:
        scaled = scaled * (upper - lower) + lower
    return scaled, lo, hi


if __name__ == "__main__":
    key = jax.random.PRNGKey(0)
    k1, k2 = jax.random.split(key)

    # Case 1: single-pass path, default bounds (0, 1). D=64 pads to one
    # 128-lane tile; the whole batch stays resident per feature tile.
    b1, d1 = 16, 64
    x1 = jax.random.normal(k1, (b1, d1), dtype=jnp.float32) * 3.0 + 1.5
    y1, lo1, hi1 = scaler_forward(x1, 0.0, 1.0)
    jax.block_until_ready((y1, lo1, hi1))
    y1r, lo1r, hi1r = _reference(x1, 0.0, 1.0)
    assert y1.shape == x1.shape and lo1.shape == (1, d1) and hi1.shape == (1, d1)
    assert jnp.allclose(y1, y1r, atol=1e-5, rtol=1e-5)
    assert jnp.allclose(lo1, lo1r, atol=1e-6)
    assert jnp.allclose(hi1, hi1r, atol=1e-6)

    # Case 2: non-default bounds (-1, 2) exercises the affine-rescale branch.
    y2, _, _ = scaler_forward(x1, -1.0, 2.0)
    jax.block_until_ready(y2)
    y2r, _, _ = _reference(x1, -1.0, 2.0)
    assert jnp.allclose(y2, y2r, atol=1e-5, rtol=1e-5)

    # Case 3: forced two-pass (large-batch fallback) with a ragged batch and a
    # non-128-multiple feature count — exercises masking, padding and the
    # accumulator (pl.when) init path.
    b3, d3 = 21, 200
    x3 = jax.random.normal(k2, (b3, d3), dtype=jnp.float32) * 2.0 - 0.5
    y3, lo3, hi3 = scaler_forward(x3, -1.0, 2.0, force_two_pass=True,
                                  tile_d=128, tile_b=8)
    jax.block_until_ready((y3, lo3, hi3))
    y3r, lo3r, hi3r = _reference(x3, -1.0, 2.0)
    assert y3.shape == x3.shape and lo3.shape == (1, d3) and hi3.shape == (1, d3)
    assert jnp.allclose(y3, y3r, atol=1e-5, rtol=1e-5)
    assert jnp.allclose(lo3, lo3r, atol=1e-6)
    assert jnp.allclose(hi3, hi3r, atol=1e-6)

    print("KERNEL_OK")
</pallas_src>

<mosaic_0001>
module attributes {stable_mosaic.version = 11 : i64} {
  func.func @_scaler_onepass_kernel(%arg0: i32, %arg1: memref<16x128xf32, #tpu.memory_space<vmem>>, %arg2: memref<16x128xf32, #tpu.memory_space<vmem>>, %arg3: memref<1x128xf32, #tpu.memory_space<vmem>>, %arg4: memref<1x128xf32, #tpu.memory_space<vmem>>) attributes {dimension_semantics = [#tpu.dimension_semantics<parallel>], iteration_bounds = array<i64: 1>, scalar_prefetch = 0 : i64, scratch_operands = 0 : i64, tpu.core_type = #tpu.core_type<tc>, window_params = [{transform_indices = @transform_0, window_bounds = array<i64: 16, 128>}, {transform_indices = @transform_1, window_bounds = array<i64: 16, 128>}, {transform_indices = @transform_2, window_bounds = array<i64: 1, 128>}, {transform_indices = @transform_3, window_bounds = array<i64: 1, 128>}]} {
    %c0 = arith.constant 0 : index
    %c0_0 = arith.constant 0 : index
    %0 = vector.load %arg1[%c0, %c0_0] : memref<16x128xf32, #tpu.memory_space<vmem>>, vector<16x128xf32>
    %cst = arith.constant dense<0x7F800000> : vector<128xf32>
    %1 = vector.multi_reduction <minimumf>, %0, %cst [0] : vector<16x128xf32> to vector<128xf32>
    %2 = vector.shape_cast %1 : vector<128xf32> to vector<1x128xf32>
    %cst_1 = arith.constant dense<0xFF800000> : vector<128xf32>
    %3 = vector.multi_reduction <maximumf>, %0, %cst_1 [0] : vector<16x128xf32> to vector<128xf32>
    %4 = vector.shape_cast %3 : vector<128xf32> to vector<1x128xf32>
    %5 = vector.broadcast %2 : vector<1x128xf32> to vector<16x128xf32>
    %6 = arith.subf %0, %5 : vector<16x128xf32>
    %7 = arith.subf %4, %2 : vector<1x128xf32>
    %cst_2 = arith.constant 9.99999974E-6 : f32
    %8 = vector.broadcast %cst_2 : f32 to vector<1x128xf32>
    %9 = arith.addf %7, %8 : vector<1x128xf32>
    %10 = tpu.reciprocal %9 : vector<1x128xf32> -> vector<1x128xf32>
    %11 = vector.broadcast %10 : vector<1x128xf32> to vector<16x128xf32>
    %12 = arith.mulf %6, %11 : vector<16x128xf32>
    %c0_3 = arith.constant 0 : index
    %c0_4 = arith.constant 0 : index
    %13 = vector.load %arg2[%c0_3, %c0_4] : memref<16x128xf32, #tpu.memory_space<vmem>>, vector<16x128xf32>
    tpu.vector_store %arg2[%c0_3, %c0_4], %12 {strides = array<i32>} : memref<16x128xf32, #tpu.memory_space<vmem>>, vector<16x128xf32>,
    %c0_5 = arith.constant 0 : index
    %c0_6 = arith.constant 0 : index
    %14 = vector.load %arg3[%c0_5, %c0_6] : memref<1x128xf32, #tpu.memory_space<vmem>>, vector<1x128xf32>
    tpu.vector_store %arg3[%c0_5, %c0_6], %2 {strides = array<i32>} : memref<1x128xf32, #tpu.memory_space<vmem>>, vector<1x128xf32>,
    %c0_7 = arith.constant 0 : index
    %c0_8 = arith.constant 0 : index
    %15 = vector.load %arg4[%c0_7, %c0_8] : memref<1x128xf32, #tpu.memory_space<vmem>>, vector<1x128xf32>
    tpu.vector_store %arg4[%c0_7, %c0_8], %4 {strides = array<i32>} : memref<1x128xf32, #tpu.memory_space<vmem>>, vector<1x128xf32>,
    return
  }
  func.func @transform_0(%arg0: i32) -> (i32, i32) {
    %c0_i32 = arith.constant 0 : i32
    %c0_i32_0 = arith.constant 0 : i32
    return %c0_i32, %arg0 : i32, i32
  }
  func.func @transform_1(%arg0: i32) -> (i32, i32) {
    %c0_i32 = arith.constant 0 : i32
    %c0_i32_0 = arith.constant 0 : i32
    return %c0_i32, %arg0 : i32, i32
  }
  func.func @transform_2(%arg0: i32) -> (i32, i32) {
    %c0_i32 = arith.constant 0 : i32
    %c0_i32_0 = arith.constant 0 : i32
    return %c0_i32, %arg0 : i32, i32
  }
  func.func @transform_3(%arg0: i32) -> (i32, i32) {
    %c0_i32 = arith.constant 0 : i32
    %c0_i32_0 = arith.constant 0 : i32
    return %c0_i32, %arg0 : i32, i32
  }
}

</mosaic_0001>

<llo_original>
// kernel: tpu_custom_call.1
$region0: #{tpu_custom_call.1}
  #allocation0 [shape = 'u32[]', space=smem, size = 0x4, offset = 0x4, fixed_abs, tag = 'smem constant byte address 0x4 - core index']
  #allocation1 [shape = 'u32[144,128]{1,0:T(1,128)}', space=vmem, size = 0x12000, scoped, tag = 'internal scratch']
  %s0 = inlined_call_operand.hbm [shape: f32[16,128], index: 0, kind: input, shape index: {}]
  %s1 = inlined_call_operand.hbm [shape: f32[16,128], index: 1, kind: output, shape index: {0}]
  %s2 = inlined_call_operand.hbm [shape: f32[1,128], index: 2, kind: output, shape index: {1}]
  %s3 = inlined_call_operand.hbm [shape: f32[1,128], index: 3, kind: output, shape index: {2}]
  %4 = xla_tuple %s1, %s2, %s3
  %s5 = sld [smem:[#allocation0]]
  $region34: #{tpu_custom_call.1} parent=0
    _
  %s7 = ssub.s32 1, %s5
  %s8 = scalar_select 0, %s7, %s5
  $region1: #{tpu_custom_call.1} parent=0
    #allocation2 [shape = 'u8[8192]{0}', space=vmem, size = 0x2000, scoped, tag = 'input window, operand 0, single buffered']
    #allocation3 [shape = 's32[1]{0}', space=sflag, size = 0x4, scoped, tag = 'scoped memory for tpu_custom_call.1']
    #allocation4 [shape = 's32[1]{0}', space=sflag, size = 0x4, scoped, tag = 'scoped memory for tpu_custom_call.1']
    #allocation5 [shape = 'u8[8192]{0}', space=vmem, size = 0x2000, scoped, tag = 'output window, operand 0, single buffered']
    #allocation6 [shape = 'u8[512]{0}', space=vmem, size = 0x400, scoped, tag = 'output window, operand 1, single buffered']
    #allocation7 [shape = 's32[1]{0}', space=sflag, size = 0x4, scoped, tag = 'scoped memory for tpu_custom_call.1']
    #allocation8 [shape = 'u8[512]{0}', space=vmem, size = 0x400, scoped, tag = 'output window, operand 2, single buffered']
    %9 = vsyncpa [#allocation3], 0
    %10 = vsyncpa [#allocation4], 0
    %11 = vsyncpa [#allocation7], 0
    // Predicated region
    $region2: #{tpu_custom_call.1} parent=1 // pred_check
      _
    $region3: #{tpu_custom_call.1} parent=1 // pred_check_branch
      %13 = sbr.rel (0) target = $region5
    $region4: #{tpu_custom_call.1} parent=1 // pred_region
      %s15 = ssub.s32 256, 256
      %16 = vsyncadd [#allocation3], %s15
      %s17 = sshll.u32 [#allocation2], 4
      %s18 = int_to_ptr.vmem [resolvable:$true] %s17
      %23 = dma.hbm_to_vmem [thread:$0]  %s0, 256, %s18, [#allocation3], 128, 128, 8
    $region5: #{tpu_custom_call.1} parent=1 // pred_fallthru
      _
    // Predicated region
    $region6: #{tpu_custom_call.1} parent=1 // pred_check
      _
    $region7: #{tpu_custom_call.1} parent=1 // pred_check_branch
      %25 = sbr.rel (0) target = $region9
    $region8: #{tpu_custom_call.1} parent=1 // pred_region
      %26 = dma.done [#allocation3], 256
    $region9: #{tpu_custom_call.1} parent=1 // pred_fallthru
      _
    %v27 = vld [vmem:[#allocation2] sm:$0xff]
    %v28 = vld [vmem:[#allocation2 + $0x8] sm:$0xff]
    %v29 = vmin.f32 %v27, %v28
    %v30 = vrot.slane %v29, 4
    %v31 = vmin.f32 %v29, %v30
    %v32 = vrot.slane %v31, 2
    %v33 = vmin.f32 %v31, %v32
    %v34 = vrot.slane %v33, 1
    %v35 = vmin.f32 %v33, %v34
    %v36 = vmax.f32 %v27, %v28
    %v37 = vrot.slane %v36, 4
    %v38 = vmax.f32 %v36, %v37
    %v39 = vrot.slane %v38, 2
    %v40 = vmax.f32 %v38, %v39
    %v41 = vrot.slane %v40, 1
    %v42 = vmax.f32 %v40, %v41
    %v43 = vsub.f32 %v27, %v35
    %v44 = vsub.f32 %v28, %v35
    %v45 = vsub.f32 %v42, %v35
    %v46 = vadd.f32 %v45, 1e-05
    %v47 = vrcp.pop %v46
    %v48 = vmul.f32 %v43, %v47
    %v49 = vmul.f32 %v44, %v47
    %50 = vst [vmem:[#allocation5] sm:$0xff] %v48
    %51 = vst [vmem:[#allocation5 + $0x8] sm:$0xff] %v49
    %52 = vst [vmem:[#allocation6] sm:$0x1] %v35
    %53 = vst [vmem:[#allocation8] sm:$0x1] %v42
    // Predicated region
    $region10: #{tpu_custom_call.1} parent=1 // pred_check
      _
    $region11: #{tpu_custom_call.1} parent=1 // pred_check_branch
      %55 = sbr.rel (0) target = $region13
    $region12: #{tpu_custom_call.1} parent=1 // pred_region
      %s57 = ssub.s32 256, 256
      %58 = vsyncadd [#allocation4], %s57
      %s59 = sshll.u32 [#allocation5], 4
      %s60 = int_to_ptr.vmem [resolvable:$true] %s59
      %65 = dma.vmem_to_hbm [thread:$0]  %s60, 256, %s1, [#allocation4], 128, 128, 8
    $region13: #{tpu_custom_call.1} parent=1 // pred_fallthru
      _
    // Predicated region
    $region14: #{tpu_custom_call.1} parent=1 // pred_check
      _
    $region15: #{tpu_custom_call.1} parent=1 // pred_check_branch
      %67 = sbr.rel (0) target = $region17
    $region16: #{tpu_custom_call.1} parent=1 // pred_region
      %s69 = ssub.s32 16, 16
      %70 = vsyncadd [#allocation7], %s69
      %s72 = sshll.u32 [#allocation6], 4
      %s73 = int_to_ptr.vmem [resolvable:$true] %s72
      %75 = dma.vmem_to_hbm [thread:$0]  %s73, 16, %s2, [#allocation7]
    $region17: #{tpu_custom_call.1} parent=1 // pred_fallthru
      _
    // Predicated region
    $region18: #{tpu_custom_call.1} parent=1 // pred_check
      _
    $region19: #{tpu_custom_call.1} parent=1 // pred_check_branch
      %77 = sbr.rel (0) target = $region21
    $region20: #{tpu_custom_call.1} parent=1 // pred_region
      %s79 = ssub.s32 16, 16
      %80 = vsyncadd [#allocation7], %s79
      %s82 = sshll.u32 [#allocation8], 4
      %s83 = int_to_ptr.vmem [resolvable:$true] %s82
      %85 = dma.vmem_to_hbm [thread:$0]  %s83, 16, %s3, [#allocation7]
    $region21: #{tpu_custom_call.1} parent=1 // pred_fallthru
      _
    // Predicated region
    $region22: #{tpu_custom_call.1} parent=1 // pred_check
      _
    $region23: #{tpu_custom_call.1} parent=1 // pred_check_branch
      %87 = sbr.rel (0) target = $region25
    $region24: #{tpu_custom_call.1} parent=1 // pred_region
      %88 = dma.done [#allocation4], 256
    $region25: #{tpu_custom_call.1} parent=1 // pred_fallthru
      _
    // Predicated region
    $region26: #{tpu_custom_call.1} parent=1 // pred_check
      _
    $region27: #{tpu_custom_call.1} parent=1 // pred_check_branch
      %90 = sbr.rel (0) target = $region29
    $region28: #{tpu_custom_call.1} parent=1 // pred_region
      %91 = dma.done [#allocation7], 16
    $region29: #{tpu_custom_call.1} parent=1 // pred_fallthru
      _
    // Predicated region
    $region30: #{tpu_custom_call.1} parent=1 // pred_check
      _
    $region31: #{tpu_custom_call.1} parent=1 // pred_check_branch
      %93 = sbr.rel (0) target = $region33
    $region32: #{tpu_custom_call.1} parent=1 // pred_region
      %94 = dma.done [#allocation7], 16
    $region33: #{tpu_custom_call.1} parent=1 // pred_fallthru
      _
    %95 = vsyncpa [#allocation3], 1
    %96 = vsyncpa [#allocation4], 1
    %97 = vsyncpa [#allocation7], 1

</llo_original>
